<compile_context>
chip_gen: v5e
topology: v5e:2x2
jax: 0.10.0
libtpu: 0.0.40
codegen_flags: <defaults>
</compile_context>

<pallas_src>
import jax
import jax.numpy as jnp
from jax.experimental import pallas as pl
from jax.experimental.pallas import tpu as pltpu


def _round_up(n, m):
    return (n + m - 1) // m * m


def _pad2d(a, rows, cols):
    return jnp.pad(a, ((0, rows - a.shape[0]), (0, cols - a.shape[1])))


def _make_residual_kernel(use_proj):
    def kernel(x_ref, w1_ref, b1_ref, w2_ref, b2_ref, *rest):
        if use_proj:
            w3_ref, b3_ref, out_ref = rest
        else:
            (out_ref,) = rest

        x = x_ref[...]                                          # [TN, Cin_p]

        # conv1 + bn1 (BN pre-folded into w1/b1), f32 accumulation on the MXU.
        y = jnp.dot(x, w1_ref[...],
                    preferred_element_type=jnp.float32) + b1_ref[...]
        y = jnp.maximum(y, 0.0)                                 # ReLU

        # conv2 + bn2 (BN pre-folded); feed the matmul in the model dtype.
        y = jnp.dot(y.astype(w2_ref.dtype), w2_ref[...],
                    preferred_element_type=jnp.float32) + b2_ref[...]

        # shortcut branch
        if use_proj:
            sc = jnp.dot(x, w3_ref[...],
                         preferred_element_type=jnp.float32) + b3_ref[...]
        else:
            sc = x.astype(jnp.float32)

        out_ref[...] = jnp.maximum(y + sc, 0.0).astype(out_ref.dtype)

    return kernel


def residual_forward(x, params, *, strides=1, use_1x1conv=False,
                     eps=1e-5, row_tile=512):
    """Pallas forward of the PyTorch `Residual` block (BN in eval mode).

    x: [B, C_in, L] (PyTorch NCL layout). Returns [B, C_mid, L_out].
    """
    B, c_in, _ = x.shape
    c_mid = params["w1"].shape[0]
    dtype = x.dtype

    # kernel_size=1 conv with stride s just subsamples positions.
    xs = x[:, :, ::strides]
    l_out = xs.shape[2]
    n = B * l_out

    # channels-last + flatten rows: lane dim = channels.
    x2 = xs.transpose(0, 2, 1).reshape(n, c_in)

    # Lane-dense padding (channels -> x128) and row tiling (rows -> x8 / tile).
    cin_p = _round_up(c_in, 128)
    cmid_p = _round_up(c_mid, 128)
    tn = min(row_tile, _round_up(n, 8))
    n_p = _round_up(n, tn)

    x_p = _pad2d(x2, n_p, cin_p)

    def fold_conv_bn(w, b, g, be, m, v):
        # Fold eval-mode BN into the 1x1 conv: y = (x @ W + b) * s + shift
        #   == x @ (W * s) + ((b - m) * s + be),  s = g / sqrt(v + eps)
        s = g / jnp.sqrt(v + eps)
        w_eff = jnp.squeeze(w, -1).T * s[None, :]       # [Cin, Cout]
        b_eff = (b - m) * s + be                        # [Cout]
        return w_eff, b_eff

    w1_eff, b1_eff = fold_conv_bn(params["w1"], params["b1"], params["g1"],
                                  params["be1"], params["m1"], params["v1"])
    w2_eff, b2_eff = fold_conv_bn(params["w2"], params["b2"], params["g2"],
                                  params["be2"], params["m2"], params["v2"])

    def prep_w(w, rows_p, cols_p):
        return _pad2d(w.astype(dtype), rows_p, cols_p)

    def prep_b(b, cols_p):
        return _pad2d(b.reshape(1, -1).astype(jnp.float32), 1, cols_p)

    inputs = [
        x_p,
        prep_w(w1_eff, cin_p, cmid_p),
        prep_b(b1_eff, cmid_p),
        prep_w(w2_eff, cmid_p, cmid_p),
        prep_b(b2_eff, cmid_p),
    ]
    if use_1x1conv:
        inputs += [
            prep_w(jnp.squeeze(params["w3"], -1).T, cin_p, cmid_p),
            prep_b(params["b3"], cmid_p),
        ]

    in_specs = [pl.BlockSpec((tn, cin_p), lambda i: (i, 0))]
    in_specs += [pl.BlockSpec(a.shape, lambda i: (0, 0)) for a in inputs[1:]]
    out_specs = pl.BlockSpec((tn, cmid_p), lambda i: (i, 0))

    flops = 2 * n_p * cin_p * cmid_p + 2 * n_p * cmid_p * cmid_p
    if use_1x1conv:
        flops += 2 * n_p * cin_p * cmid_p
    bytes_accessed = sum(a.size * a.dtype.itemsize for a in inputs)
    bytes_accessed += n_p * cmid_p * dtype.itemsize
    cost = pl.CostEstimate(flops=int(flops), transcendentals=0,
                           bytes_accessed=int(bytes_accessed))

    out = pl.pallas_call(
        _make_residual_kernel(use_1x1conv),
        out_shape=jax.ShapeDtypeStruct((n_p, cmid_p), dtype),
        grid=(n_p // tn,),
        in_specs=in_specs,
        out_specs=out_specs,
        compiler_params=pltpu.CompilerParams(
            dimension_semantics=("parallel",)),
        cost_estimate=cost,
    )(*inputs)

    out = out[:n, :c_mid].reshape(B, l_out, c_mid).transpose(0, 2, 1)
    return out


def residual_reference(x, p, *, strides=1, use_1x1conv=False, eps=1e-5):
    """Pure-JAX reference (eval-mode BatchNorm)."""
    hi = jax.lax.Precision.HIGHEST

    def conv1x1(v, w, b):
        w2d = jnp.squeeze(w, -1)                       # [Cout, Cin]
        return jnp.einsum("bcl,oc->bol", v, w2d, precision=hi) + b[None, :, None]

    def bn(v, g, be, m, var):
        return ((v - m[None, :, None])
                * (g[None, :, None] / jnp.sqrt(var[None, :, None] + eps))
                + be[None, :, None])

    xs = x[:, :, ::strides]
    y = jax.nn.relu(bn(conv1x1(xs, p["w1"], p["b1"]),
                       p["g1"], p["be1"], p["m1"], p["v1"]))
    y = bn(conv1x1(y, p["w2"], p["b2"]), p["g2"], p["be2"], p["m2"], p["v2"])
    sc = conv1x1(xs, p["w3"], p["b3"]) if use_1x1conv else xs
    return jax.nn.relu(y + sc)


def make_params(key, c_in, c_mid, use_1x1conv):
    ks = jax.random.split(key, 14)

    def uinit(k, shape, fan_in):
        bound = 1.0 / (fan_in ** 0.5)
        return jax.random.uniform(k, shape, jnp.float32, -bound, bound)

    p = {
        "w1": uinit(ks[0], (c_mid, c_in, 1), c_in),
        "b1": uinit(ks[1], (c_mid,), c_in),
        "g1": jax.random.uniform(ks[2], (c_mid,), jnp.float32, 0.5, 1.5),
        "be1": 0.1 * jax.random.normal(ks[3], (c_mid,), jnp.float32),
        "m1": 0.1 * jax.random.normal(ks[4], (c_mid,), jnp.float32),
        "v1": jax.random.uniform(ks[5], (c_mid,), jnp.float32, 0.5, 1.5),
        "w2": uinit(ks[6], (c_mid, c_mid, 1), c_mid),
        "b2": uinit(ks[7], (c_mid,), c_mid),
        "g2": jax.random.uniform(ks[8], (c_mid,), jnp.float32, 0.5, 1.5),
        "be2": 0.1 * jax.random.normal(ks[9], (c_mid,), jnp.float32),
        "m2": 0.1 * jax.random.normal(ks[10], (c_mid,), jnp.float32),
        "v2": jax.random.uniform(ks[11], (c_mid,), jnp.float32, 0.5, 1.5),
    }
    if use_1x1conv:
        p["w3"] = uinit(ks[12], (c_mid, c_in, 1), c_in)
        p["b3"] = uinit(ks[13], (c_mid,), c_in)
    return p


if __name__ == "__main__":
    key = jax.random.PRNGKey(0)
    k0, k1, k2, k3 = jax.random.split(key, 4)

    # Config 1: projection shortcut + stride 2
    # (Residual(4, 8, use_1x1conv=True, strides=2))
    B, c_in, c_mid, L = 2, 4, 8, 16
    x1 = jax.random.normal(k0, (B, c_in, L), jnp.float32)
    p1 = make_params(k1, c_in, c_mid, use_1x1conv=True)
    out1 = jax.block_until_ready(
        residual_forward(x1, p1, strides=2, use_1x1conv=True))
    ref1 = jax.block_until_ready(
        residual_reference(x1, p1, strides=2, use_1x1conv=True))
    assert out1.shape == ref1.shape, (out1.shape, ref1.shape)
    assert jnp.allclose(out1, ref1, rtol=1e-4, atol=1e-4), (
        float(jnp.max(jnp.abs(out1 - ref1))))

    # Config 2: identity shortcut, stride 1  (Residual(8, 8))
    c_in2 = c_mid2 = 8
    x2 = jax.random.normal(k2, (B, c_in2, L), jnp.float32)
    p2 = make_params(k3, c_in2, c_mid2, use_1x1conv=False)
    out2 = jax.block_until_ready(
        residual_forward(x2, p2, strides=1, use_1x1conv=False))
    ref2 = jax.block_until_ready(
        residual_reference(x2, p2, strides=1, use_1x1conv=False))
    assert out2.shape == ref2.shape, (out2.shape, ref2.shape)
    assert jnp.allclose(out2, ref2, rtol=1e-4, atol=1e-4), (
        float(jnp.max(jnp.abs(out2 - ref2))))

    print("KERNEL_OK")
</pallas_src>

<mosaic_0001>
module attributes {stable_mosaic.version = 11 : i64} {
  func.func @kernel(%arg0: i32, %arg1: memref<16x128xf32, #tpu.memory_space<vmem>>, %arg2: memref<128x128xf32, #tpu.memory_space<vmem>>, %arg3: memref<1x128xf32, #tpu.memory_space<vmem>>, %arg4: memref<128x128xf32, #tpu.memory_space<vmem>>, %arg5: memref<1x128xf32, #tpu.memory_space<vmem>>, %arg6: memref<128x128xf32, #tpu.memory_space<vmem>>, %arg7: memref<1x128xf32, #tpu.memory_space<vmem>>, %arg8: memref<16x128xf32, #tpu.memory_space<vmem>>) attributes {dimension_semantics = [#tpu.dimension_semantics<parallel>], iteration_bounds = array<i64: 1>, scalar_prefetch = 0 : i64, scratch_operands = 0 : i64, tpu.core_type = #tpu.core_type<tc>, window_params = [{transform_indices = @transform_0, window_bounds = array<i64: 16, 128>}, {pipeline_mode = #tpu.pipeline_mode<synchronous>, transform_indices = @transform_1, window_bounds = array<i64: 128, 128>}, {pipeline_mode = #tpu.pipeline_mode<synchronous>, transform_indices = @transform_2, window_bounds = array<i64: 1, 128>}, {pipeline_mode = #tpu.pipeline_mode<synchronous>, transform_indices = @transform_3, window_bounds = array<i64: 128, 128>}, {pipeline_mode = #tpu.pipeline_mode<synchronous>, transform_indices = @transform_4, window_bounds = array<i64: 1, 128>}, {pipeline_mode = #tpu.pipeline_mode<synchronous>, transform_indices = @transform_5, window_bounds = array<i64: 128, 128>}, {pipeline_mode = #tpu.pipeline_mode<synchronous>, transform_indices = @transform_6, window_bounds = array<i64: 1, 128>}, {transform_indices = @transform_7, window_bounds = array<i64: 16, 128>}]} {
    %c0 = arith.constant 0 : index
    %c0_0 = arith.constant 0 : index
    %0 = vector.load %arg1[%c0, %c0_0] : memref<16x128xf32, #tpu.memory_space<vmem>>, vector<16x128xf32>
    %c0_1 = arith.constant 0 : index
    %c0_2 = arith.constant 0 : index
    %1 = vector.load %arg2[%c0_1, %c0_2] : memref<128x128xf32, #tpu.memory_space<vmem>>, vector<128x128xf32>
    %cst = arith.constant dense<0.000000e+00> : vector<16x128xf32>
    %2 = tpu.matmul %0, %1, %cst {dimension_numbers = #tpu.dot_dimension_numbers<[1], [0], [0], [1], [0, 0, 1, 1], [], []>} : vector<16x128xf32>, vector<128x128xf32>, vector<16x128xf32> -> vector<16x128xf32>
    %c0_3 = arith.constant 0 : index
    %c0_4 = arith.constant 0 : index
    %3 = vector.load %arg3[%c0_3, %c0_4] : memref<1x128xf32, #tpu.memory_space<vmem>>, vector<1x128xf32>
    %4 = vector.broadcast %3 : vector<1x128xf32> to vector<16x128xf32>
    %5 = arith.addf %2, %4 : vector<16x128xf32>
    %cst_5 = arith.constant 0.000000e+00 : f32
    %6 = vector.broadcast %cst_5 : f32 to vector<16x128xf32>
    %7 = arith.maximumf %5, %6 : vector<16x128xf32>
    %c0_6 = arith.constant 0 : index
    %c0_7 = arith.constant 0 : index
    %8 = vector.load %arg4[%c0_6, %c0_7] : memref<128x128xf32, #tpu.memory_space<vmem>>, vector<128x128xf32>
    %cst_8 = arith.constant dense<0.000000e+00> : vector<16x128xf32>
    %9 = tpu.matmul %7, %8, %cst_8 {dimension_numbers = #tpu.dot_dimension_numbers<[1], [0], [0], [1], [0, 0, 1, 1], [], []>} : vector<16x128xf32>, vector<128x128xf32>, vector<16x128xf32> -> vector<16x128xf32>
    %c0_9 = arith.constant 0 : index
    %c0_10 = arith.constant 0 : index
    %10 = vector.load %arg5[%c0_9, %c0_10] : memref<1x128xf32, #tpu.memory_space<vmem>>, vector<1x128xf32>
    %11 = vector.broadcast %10 : vector<1x128xf32> to vector<16x128xf32>
    %12 = arith.addf %9, %11 : vector<16x128xf32>
    %c0_11 = arith.constant 0 : index
    %c0_12 = arith.constant 0 : index
    %13 = vector.load %arg6[%c0_11, %c0_12] : memref<128x128xf32, #tpu.memory_space<vmem>>, vector<128x128xf32>
    %cst_13 = arith.constant dense<0.000000e+00> : vector<16x128xf32>
    %14 = tpu.matmul %0, %13, %cst_13 {dimension_numbers = #tpu.dot_dimension_numbers<[1], [0], [0], [1], [0, 0, 1, 1], [], []>} : vector<16x128xf32>, vector<128x128xf32>, vector<16x128xf32> -> vector<16x128xf32>
    %c0_14 = arith.constant 0 : index
    %c0_15 = arith.constant 0 : index
    %15 = vector.load %arg7[%c0_14, %c0_15] : memref<1x128xf32, #tpu.memory_space<vmem>>, vector<1x128xf32>
    %16 = vector.broadcast %15 : vector<1x128xf32> to vector<16x128xf32>
    %17 = arith.addf %14, %16 : vector<16x128xf32>
    %18 = arith.addf %12, %17 : vector<16x128xf32>
    %cst_16 = arith.constant 0.000000e+00 : f32
    %19 = vector.broadcast %cst_16 : f32 to vector<16x128xf32>
    %20 = arith.maximumf %18, %19 : vector<16x128xf32>
    %c0_17 = arith.constant 0 : index
    %c0_18 = arith.constant 0 : index
    %21 = vector.load %arg8[%c0_17, %c0_18] : memref<16x128xf32, #tpu.memory_space<vmem>>, vector<16x128xf32>
    tpu.vector_store %arg8[%c0_17, %c0_18], %20 {strides = array<i32>} : memref<16x128xf32, #tpu.memory_space<vmem>>, vector<16x128xf32>,
    return
  }
  func.func @transform_0(%arg0: i32) -> (i32, i32) {
    %c0_i32 = arith.constant 0 : i32
    %c0_i32_0 = arith.constant 0 : i32
    return %arg0, %c0_i32 : i32, i32
  }
  func.func @transform_1(%arg0: i32) -> (i32, i32) {
    %c0_i32 = arith.constant 0 : i32
    %c0_i32_0 = arith.constant 0 : i32
    %c0_i32_1 = arith.constant 0 : i32
    return %c0_i32, %c0_i32_0 : i32, i32
  }
  func.func @transform_2(%arg0: i32) -> (i32, i32) {
    %c0_i32 = arith.constant 0 : i32
    %c0_i32_0 = arith.constant 0 : i32
    %c0_i32_1 = arith.constant 0 : i32
    return %c0_i32, %c0_i32_0 : i32, i32
  }
  func.func @transform_3(%arg0: i32) -> (i32, i32) {
    %c0_i32 = arith.constant 0 : i32
    %c0_i32_0 = arith.constant 0 : i32
    %c0_i32_1 = arith.constant 0 : i32
    return %c0_i32, %c0_i32_0 : i32, i32
  }
  func.func @transform_4(%arg0: i32) -> (i32, i32) {
    %c0_i32 = arith.constant 0 : i32
    %c0_i32_0 = arith.constant 0 : i32
    %c0_i32_1 = arith.constant 0 : i32
    return %c0_i32, %c0_i32_0 : i32, i32
  }
  func.func @transform_5(%arg0: i32) -> (i32, i32) {
    %c0_i32 = arith.constant 0 : i32
    %c0_i32_0 = arith.constant 0 : i32
    %c0_i32_1 = arith.constant 0 : i32
    return %c0_i32, %c0_i32_0 : i32, i32
  }
  func.func @transform_6(%arg0: i32) -> (i32, i32) {
    %c0_i32 = arith.constant 0 : i32
    %c0_i32_0 = arith.constant 0 : i32
    %c0_i32_1 = arith.constant 0 : i32
    return %c0_i32, %c0_i32_0 : i32, i32
  }
  func.func @transform_7(%arg0: i32) -> (i32, i32) {
    %c0_i32 = arith.constant 0 : i32
    %c0_i32_0 = arith.constant 0 : i32
    return %arg0, %c0_i32 : i32, i32
  }
}

</mosaic_0001>

<llo_original>
// kernel: tpu_custom_call.1
$region0: #{tpu_custom_call.1}
  #allocation0 [shape = 'u32[]', space=smem, size = 0x4, offset = 0x4, fixed_abs, tag = 'smem constant byte address 0x4 - core index']
  #allocation1 [shape = 'u32[72,128]{1,0:T(1,128)}', space=vmem, size = 0x9000, scoped, tag = 'internal scratch']
  %s0 = inlined_call_operand.hbm [shape: f32[16,128], index: 0, kind: input, shape index: {}]
  %s1 = inlined_call_operand.hbm [shape: f32[128,128], index: 1, kind: input, shape index: {}]
  %s2 = inlined_call_operand.vmem [shape: f32[1,128], index: 2, kind: input, shape index: {}]
  %s3 = inlined_call_operand.hbm [shape: f32[128,128], index: 3, kind: input, shape index: {}]
  %s4 = inlined_call_operand.vmem [shape: f32[1,128], index: 4, kind: input, shape index: {}]
  %s5 = inlined_call_operand.hbm [shape: f32[128,128], index: 5, kind: input, shape index: {}]
  %s6 = inlined_call_operand.vmem [shape: f32[1,128], index: 6, kind: input, shape index: {}]
  %s7 = inlined_call_operand.hbm [shape: f32[16,128], index: 7, kind: output, shape index: {}]
  %s8 = sld [smem:[#allocation0]]
  $region54: #{tpu_custom_call.1} parent=0
    _
  %s10 = ssub.s32 1, %s8
  %s11 = scalar_select 0, %s10, %s8
  $region1: #{tpu_custom_call.1} parent=0
    #allocation2 [shape = 'u8[8192]{0}', space=vmem, size = 0x2000, scoped, tag = 'input window, operand 0, single buffered']
    #allocation3 [shape = 's32[1]{0}', space=sflag, size = 0x4, scoped, tag = 'scoped memory for tpu_custom_call.1']
    #allocation4 [shape = 's32[1]{0}', space=sflag, size = 0x4, scoped, tag = 'scoped memory for tpu_custom_call.1']
    #allocation5 [shape = 'u8[65536]{0}', space=vmem, size = 0x10000, scoped, tag = 'input window, operand 1, single buffered']
    #allocation6 [shape = 's32[1]{0}', space=sflag, size = 0x4, scoped, tag = 'scoped memory for tpu_custom_call.1']
    #allocation7 [shape = 'u8[65536]{0}', space=vmem, size = 0x10000, scoped, tag = 'input window, operand 3, single buffered']
    #allocation8 [shape = 'u8[65536]{0}', space=vmem, size = 0x10000, scoped, tag = 'input window, operand 5, single buffered']
    #allocation9 [shape = 's32[1]{0}', space=sflag, size = 0x4, scoped, tag = 'scoped memory for tpu_custom_call.1']
    #allocation10 [shape = 'u8[8192]{0}', space=vmem, size = 0x2000, scoped, tag = 'output window, operand 0, single buffered']
    %12 = vsyncpa [#allocation3], 0
    %13 = vsyncpa [#allocation6], 0
    %14 = vsyncpa [#allocation9], 0
    %15 = vsyncpa [#allocation4], 0
    // Predicated region
    $region2: #{tpu_custom_call.1} parent=1 // pred_check
      _
    $region3: #{tpu_custom_call.1} parent=1 // pred_check_branch
      %17 = sbr.rel (0) target = $region5
    $region4: #{tpu_custom_call.1} parent=1 // pred_region
      %19 = vsyncadd [#allocation3], 0
      %s20 = sshll.u32 %s0, 4
      %s21 = int_to_ptr.hbm [resolvable:$true] %s20
      %s22 = sshll.u32 [#allocation2], 4
      %s23 = int_to_ptr.vmem [resolvable:$true] %s22
      %28 = dma.hbm_to_vmem [thread:$0]  %s21, 256, %s23, [#allocation3], 128, 128, 8
    $region5: #{tpu_custom_call.1} parent=1 // pred_fallthru
      _
    // Predicated region
    $region6: #{tpu_custom_call.1} parent=1 // pred_check
      _
    $region7: #{tpu_custom_call.1} parent=1 // pred_check_branch
      %30 = sbr.rel (0) target = $region9
    $region8: #{tpu_custom_call.1} parent=1 // pred_region
      %32 = vsyncadd [#allocation6], 0
      %s33 = sshll.u32 %s1, 4
      %s34 = int_to_ptr.hbm [resolvable:$true] %s33
      %s35 = sshll.u32 [#allocation5], 4
      %s36 = int_to_ptr.vmem [resolvable:$true] %s35
      %41 = dma.hbm_to_vmem [thread:$0]  %s34, 2048, %s36, [#allocation6], 128, 128, 8
    $region9: #{tpu_custom_call.1} parent=1 // pred_fallthru
      _
    // Predicated region
    $region10: #{tpu_custom_call.1} parent=1 // pred_check
      _
    $region11: #{tpu_custom_call.1} parent=1 // pred_check_branch
      %43 = sbr.rel (0) target = $region13
    $region12: #{tpu_custom_call.1} parent=1 // pred_region
      _
    $region13: #{tpu_custom_call.1} parent=1 // pred_fallthru
      _
    // Predicated region
    $region14: #{tpu_custom_call.1} parent=1 // pred_check
      _
    $region15: #{tpu_custom_call.1} parent=1 // pred_check_branch
      %45 = sbr.rel (0) target = $region17
    $region16: #{tpu_custom_call.1} parent=1 // pred_region
      %47 = vsyncadd [#allocation6], 0
      %s48 = sshll.u32 %s3, 4
      %s49 = int_to_ptr.hbm [resolvable:$true] %s48
      %s50 = sshll.u32 [#allocation7], 4
      %s51 = int_to_ptr.vmem [resolvable:$true] %s50
      %56 = dma.hbm_to_vmem [thread:$0]  %s49, 2048, %s51, [#allocation6], 128, 128, 8
    $region17: #{tpu_custom_call.1} parent=1 // pred_fallthru
      _
    // Predicated region
    $region18: #{tpu_custom_call.1} parent=1 // pred_check
      _
    $region19: #{tpu_custom_call.1} parent=1 // pred_check_branch
      %58 = sbr.rel (0) target = $region21
    $region20: #{tpu_custom_call.1} parent=1 // pred_region
      _
    $region21: #{tpu_custom_call.1} parent=1 // pred_fallthru
      _
    // Predicated region
    $region22: #{tpu_custom_call.1} parent=1 // pred_check
      _
    $region23: #{tpu_custom_call.1} parent=1 // pred_check_branch
      %60 = sbr.rel (0) target = $region25
    $region24: #{tpu_custom_call.1} parent=1 // pred_region
      %62 = vsyncadd [#allocation9], 0
      %s63 = sshll.u32 %s5, 4
      %s64 = int_to_ptr.hbm [resolvable:$true] %s63
      %s65 = sshll.u32 [#allocation8], 4
      %s66 = int_to_ptr.vmem [resolvable:$true] %s65
      %71 = dma.hbm_to_vmem [thread:$0]  %s64, 2048, %s66, [#allocation9], 128, 128, 8
    $region25: #{tpu_custom_call.1} parent=1 // pred_fallthru
      _
    // Predicated region
    $region26: #{tpu_custom_call.1} parent=1 // pred_check
      _
    $region27: #{tpu_custom_call.1} parent=1 // pred_check_branch
      %73 = sbr.rel (0) target = $region29
    $region28: #{tpu_custom_call.1} parent=1 // pred_region
      _
    $region29: #{tpu_custom_call.1} parent=1 // pred_fallthru
      _
    // Predicated region
    $region30: #{tpu_custom_call.1} parent=1 // pred_check
      _
    $region31: #{tpu_custom_call.1} parent=1 // pred_check_branch
      %75 = sbr.rel (0) target = $region33
    $region32: #{tpu_custom_call.1} parent=1 // pred_region
      %77 = dma.done [#allocation3], 256
    $region33: #{tpu_custom_call.1} parent=1 // pred_fallthru
      _
    // Predicated region
    $region34: #{tpu_custom_call.1} parent=1 // pred_check
      _
    $region35: #{tpu_custom_call.1} parent=1 // pred_check_branch
      %79 = sbr.rel (0) target = $region37
    $region36: #{tpu_custom_call.1} parent=1 // pred_region
      %81 = dma.done [#allocation6], 2048
    $region37: #{tpu_custom_call.1} parent=1 // pred_fallthru
      _
    // Predicated region
    $region38: #{tpu_custom_call.1} parent=1 // pred_check
      _
    $region39: #{tpu_custom_call.1} parent=1 // pred_check_branch
      %83 = sbr.rel (0) target = $region41
    $region40: #{tpu_custom_call.1} parent=1 // pred_region
      %85 = dma.done [#allocation6], 2048
    $region41: #{tpu_custom_call.1} parent=1 // pred_fallthru
      _
    // Predicated region
    $region42: #{tpu_custom_call.1} parent=1 // pred_check
      _
    $region43: #{tpu_custom_call.1} parent=1 // pred_check_branch
      %87 = sbr.rel (0) target = $region45
    $region44: #{tpu_custom_call.1} parent=1 // pred_region
      %89 = dma.done [#allocation9], 2048
    $region45: #{tpu_custom_call.1} parent=1 // pred_fallthru
      _
    %v90 = vld [vmem:[#allocation2] sm:$0xff]
    %v91 = vld [vmem:[#allocation2 + $0x8] sm:$0xff]
    %v92 = vld [vmem:[#allocation5] sm:$0xff]
    %v93 = vld [vmem:[#allocation5 + $0x8] sm:$0xff]
    %v94 = vld [vmem:[#allocation5 + $0x10] sm:$0xff]
    %v95 = vld [vmem:[#allocation5 + $0x18] sm:$0xff]
    %v96 = vld [vmem:[#allocation5 + $0x20] sm:$0xff]
    %v97 = vld [vmem:[#allocation5 + $0x28] sm:$0xff]
    %v98 = vld [vmem:[#allocation5 + $0x30] sm:$0xff]
    %v99 = vld [vmem:[#allocation5 + $0x38] sm:$0xff]
    %v100 = vld [vmem:[#allocation5 + $0x40] sm:$0xff]
    %v101 = vld [vmem:[#allocation5 + $0x48] sm:$0xff]
    %v102 = vld [vmem:[#allocation5 + $0x50] sm:$0xff]
    %v103 = vld [vmem:[#allocation5 + $0x58] sm:$0xff]
    %v104 = vld [vmem:[#allocation5 + $0x60] sm:$0xff]
    %v105 = vld [vmem:[#allocation5 + $0x68] sm:$0xff]
    %v106 = vld [vmem:[#allocation5 + $0x70] sm:$0xff]
    %v107 = vld [vmem:[#allocation5 + $0x78] sm:$0xff]
    %v108 = vld [vmem:[%s2] sm:$0x1]
    %v110 = vperm.slane %v108, 0
    %112 = vmatpush.msra.mxu0 %v107
    %113 = vmatpush.msra.mxu0 %v106
    %114 = vmatpush.msra.mxu0 %v105
    %115 = vmatpush.msra.mxu0 %v104
    %116 = vmatpush.msra.mxu0 %v103
    %117 = vmatpush.msra.mxu0 %v102
    %118 = vmatpush.msra.mxu0 %v101
    %119 = vmatpush.msra.mxu0 %v100
    %120 = vmatpush.msra.mxu0 %v99
    %121 = vmatpush.msra.mxu0 %v98
    %122 = vmatpush.msra.mxu0 %v97
    %123 = vmatpush.msra.mxu0 %v96
    %124 = vmatpush.msra.mxu0 %v95
    %125 = vmatpush.msra.mxu0 %v94
    %126 = vmatpush.msra.mxu0 %v93
    %127 = vmatpush.msra.mxu0 %v92
    %128 = vmatmul.f32.gmra.mxu0 %v90
    %v129 = vpop.f32.mrf.mxu0
    %v130 = vadd.f32 %v110, %v129
    %131 = vmatmul.f32.gmra.mxu0 %v91
    %v132 = vpop.f32.mrf.mxu0
    %v133 = vadd.f32 %v110, %v132
    %134 = vdwg.mxu0
    %v135 = vmax.f32 %v130, 0.0
    %v136 = vmax.f32 %v133, 0.0
    %v137 = vld [vmem:[#allocation7] sm:$0xff]
    %v138 = vld [vmem:[#allocation7 + $0x8] sm:$0xff]
    %v139 = vld [vmem:[#allocation7 + $0x10] sm:$0xff]
    %v140 = vld [vmem:[#allocation7 + $0x18] sm:$0xff]
    %v141 = vld [vmem:[#allocation7 + $0x20] sm:$0xff]
    %v142 = vld [vmem:[#allocation7 + $0x28] sm:$0xff]
    %v143 = vld [vmem:[#allocation7 + $0x30] sm:$0xff]
    %v144 = vld [vmem:[#allocation7 + $0x38] sm:$0xff]
    %v145 = vld [vmem:[#allocation7 + $0x40] sm:$0xff]
    %v146 = vld [vmem:[#allocation7 + $0x48] sm:$0xff]
    %v147 = vld [vmem:[#allocation7 + $0x50] sm:$0xff]
    %v148 = vld [vmem:[#allocation7 + $0x58] sm:$0xff]
    %v149 = vld [vmem:[#allocation7 + $0x60] sm:$0xff]
    %v150 = vld [vmem:[#allocation7 + $0x68] sm:$0xff]
    %v151 = vld [vmem:[#allocation7 + $0x70] sm:$0xff]
    %v152 = vld [vmem:[#allocation7 + $0x78] sm:$0xff]
    %v153 = vld [vmem:[%s4] sm:$0x1]
    %v155 = vperm.slane %v153, 0
    %157 = vmatpush.msra.mxu0 %v152
    %158 = vmatpush.msra.mxu0 %v151
    %159 = vmatpush.msra.mxu0 %v150
    %160 = vmatpush.msra.mxu0 %v149
    %161 = vmatpush.msra.mxu0 %v148
    %162 = vmatpush.msra.mxu0 %v147
    %163 = vmatpush.msra.mxu0 %v146
    %164 = vmatpush.msra.mxu0 %v145
    %165 = vmatpush.msra.mxu0 %v144
    %166 = vmatpush.msra.mxu0 %v143
    %167 = vmatpush.msra.mxu0 %v142
    %168 = vmatpush.msra.mxu0 %v141
    %169 = vmatpush.msra.mxu0 %v140
    %170 = vmatpush.msra.mxu0 %v139
    %171 = vmatpush.msra.mxu0 %v138
    %172 = vmatpush.msra.mxu0 %v137
    %173 = vmatmul.f32.gmra.mxu0 %v135
    %v174 = vpop.f32.mrf.mxu0
    %v175 = vadd.f32 %v155, %v174
    %176 = vmatmul.f32.gmra.mxu0 %v136
    %v177 = vpop.f32.mrf.mxu0
    %v178 = vadd.f32 %v155, %v177
    %179 = vdwg.mxu0
    %v180 = vld [vmem:[#allocation8] sm:$0xff]
    %v181 = vld [vmem:[#allocation8 + $0x8] sm:$0xff]
    %v182 = vld [vmem:[#allocation8 + $0x10] sm:$0xff]
    %v183 = vld [vmem:[#allocation8 + $0x18] sm:$0xff]
    %v184 = vld [vmem:[#allocation8 + $0x20] sm:$0xff]
    %v185 = vld [vmem:[#allocation8 + $0x28] sm:$0xff]
    %v186 = vld [vmem:[#allocation8 + $0x30] sm:$0xff]
    %v187 = vld [vmem:[#allocation8 + $0x38] sm:$0xff]
    %v188 = vld [vmem:[#allocation8 + $0x40] sm:$0xff]
    %v189 = vld [vmem:[#allocation8 + $0x48] sm:$0xff]
    %v190 = vld [vmem:[#allocation8 + $0x50] sm:$0xff]
    %v191 = vld [vmem:[#allocation8 + $0x58] sm:$0xff]
    %v192 = vld [vmem:[#allocation8 + $0x60] sm:$0xff]
    %v193 = vld [vmem:[#allocation8 + $0x68] sm:$0xff]
    %v194 = vld [vmem:[#allocation8 + $0x70] sm:$0xff]
    %v195 = vld [vmem:[#allocation8 + $0x78] sm:$0xff]
    %v196 = vld [vmem:[%s6] sm:$0x1]
    %v198 = vperm.slane %v196, 0
    %200 = vmatpush.msra.mxu0 %v195
    %201 = vmatpush.msra.mxu0 %v194
    %202 = vmatpush.msra.mxu0 %v193
    %203 = vmatpush.msra.mxu0 %v192
    %204 = vmatpush.msra.mxu0 %v191
    %205 = vmatpush.msra.mxu0 %v190
    %206 = vmatpush.msra.mxu0 %v189
    %207 = vmatpush.msra.mxu0 %v188
    %208 = vmatpush.msra.mxu0 %v187
    %209 = vmatpush.msra.mxu0 %v186
    %210 = vmatpush.msra.mxu0 %v185
    %211 = vmatpush.msra.mxu0 %v184
    %212 = vmatpush.msra.mxu0 %v183
    %213 = vmatpush.msra.mxu0 %v182
    %214 = vmatpush.msra.mxu0 %v181
    %215 = vmatpush.msra.mxu0 %v180
    %216 = vmatmul.f32.gmra.mxu0 %v90
    %v217 = vpop.f32.mrf.mxu0
    %v218 = vadd.f32 %v198, %v217
    %219 = vmatmul.f32.gmra.mxu0 %v91
    %v220 = vpop.f32.mrf.mxu0
    %v221 = vadd.f32 %v198, %v220
    %222 = vdwg.mxu0
    %v223 = vadd.f32 %v175, %v218
    %v224 = vadd.f32 %v178, %v221
    %v225 = vmax.f32 %v223, 0.0
    %v226 = vmax.f32 %v224, 0.0
    %227 = vst [vmem:[#allocation10] sm:$0xff] %v225
    %228 = vst [vmem:[#allocation10 + $0x8] sm:$0xff] %v226
    // Predicated region
    $region46: #{tpu_custom_call.1} parent=1 // pred_check
      _
    $region47: #{tpu_custom_call.1} parent=1 // pred_check_branch
      %230 = sbr.rel (0) target = $region49
    $region48: #{tpu_custom_call.1} parent=1 // pred_region
      %232 = vsyncadd [#allocation4], 0
      %s233 = sshll.u32 [#allocation10], 4
      %s234 = int_to_ptr.vmem [resolvable:$true] %s233
      %s235 = sshll.u32 %s7, 4
      %s236 = int_to_ptr.hbm [resolvable:$true] %s235
      %241 = dma.vmem_to_hbm [thread:$0]  %s234, 256, %s236, [#allocation4], 128, 128, 8
    $region49: #{tpu_custom_call.1} parent=1 // pred_fallthru
      _
    // Predicated region
    $region50: #{tpu_custom_call.1} parent=1 // pred_check
      _
    $region51: #{tpu_custom_call.1} parent=1 // pred_check_branch
      %243 = sbr.rel (0) target = $region53
    $region52: #{tpu_custom_call.1} parent=1 // pred_region
      %245 = dma.done [#allocation4], 256
    $region53: #{tpu_custom_call.1} parent=1 // pred_fallthru
      _
    %246 = vsyncpa [#allocation3], 1
    %247 = vsyncpa [#allocation6], 1
    %248 = vsyncpa [#allocation9], 1
    %249 = vsyncpa [#allocation4], 1

</llo_original>
